<compile_context>
chip_gen: v7x
topology: tpu7x:2x2x1
jax: 0.10.0
libtpu: 0.0.40
codegen_flags: <defaults>
</compile_context>

<pallas_src>
import functools

import jax
import jax.numpy as jnp
from jax.experimental import pallas as pl
from jax.experimental.pallas import tpu as pltpu


# -----------------------------------------------------------------------------
# Concrete temporal-graph configuration (deterministic, in-script)
# -----------------------------------------------------------------------------
INPUT_SHAPE = (4, 16, 16)     # (C, H, W)  -- config['input_shape']
HIDDEN = 8                    # out_channels of both nodes
NUM_TIMESTEPS = 3

NODES = ["V1", "V2"]
INPUT_NODES = ["V1"]
OUTPUT_NODE = "V2"
PREDECESSORS = {"V1": ["V2"], "V2": ["V1"]}   # sorted(graph.predecessors(node))
OUT_CHANNELS = {"V1": HIDDEN, "V2": HIDDEN}

# TODO(synk): config/JSON parsing, networkx graph construction, topological
# sort and shape inference of the original TemporalGraph are trace-time
# meta-programming; the fixed graph above is a concrete instantiation of them,
# not a runtime kernel concern.


def init_params(key):
    """Per node: Wx (C_ff + sum C_fb, HIDDEN), Wh (HIDDEN, HIDDEN), b (1, HIDDEN)."""
    params = {}
    c_in = {
        "V1": INPUT_SHAPE[0] + OUT_CHANNELS["V2"],   # external input + fb from V2
        "V2": OUT_CHANNELS["V1"],                    # ff from V1
    }
    for i, node in enumerate(NODES):
        k1, k2, k3 = jax.random.split(jax.random.fold_in(key, i), 3)
        cin = c_in[node]
        params[node] = {
            "wx": 0.1 * jax.random.normal(k1, (cin, HIDDEN), jnp.float32),
            "wh": 0.1 * jax.random.normal(k2, (HIDDEN, HIDDEN), jnp.float32),
            "b": 0.01 * jax.random.normal(k3, (1, HIDDEN), jnp.float32),
        }
    return params


def stack_params(params):
    """Hoisted (done ONCE at init): stack both nodes' weights block-wise.

    Returns:
      w_ext_t : (2H, C)   external-input weights (V2 rows are zero)
      w_cat_t : (2H, 2H)  recurrent weights over [h_V1 ; h_V2]
      b_col   : (2H, 1)   stacked biases (column, lane-broadcast in kernel)
    """
    c = INPUT_SHAPE[0]
    p1, p2 = params["V1"], params["V2"]
    w1x_ext = p1["wx"][:c, :]        # (C,H)  external input -> V1
    w1x_fb = p1["wx"][c:, :]         # (H,H)  V2 prev output -> V1
    w1h = p1["wh"]                   # (H,H)  V1 prev state  -> V1
    w2x = p2["wx"]                   # (H,H)  V1 prev output -> V2
    w2h = p2["wh"]                   # (H,H)  V2 prev state  -> V2

    # rows = [h_V1 | h_V2] (previous state), cols = [V1 update | V2 update]
    w_cat = jnp.concatenate(
        [jnp.concatenate([w1h, w2x], axis=1),
         jnp.concatenate([w1x_fb, w2h], axis=1)], axis=0)          # (2H, 2H)
    w_ext = jnp.concatenate(
        [w1x_ext, jnp.zeros((c, HIDDEN), jnp.float32)], axis=1)    # (C, 2H)
    b_cat = jnp.concatenate([p1["b"], p2["b"]], axis=1)            # (1, 2H)

    return {"w_ext_t": w_ext.T, "w_cat_t": w_cat.T, "b_col": b_cat.T}


# -----------------------------------------------------------------------------
# Fused Pallas kernel: entire temporal unroll (all timesteps, both nodes)
#
#   x_ref   : (C, Mt)      one batch element's positions on the lane axis
#   wext_ref: (2H, C)      stacked external-input weights (transposed)
#   wcat_ref: (2H, 2H)     stacked recurrent weights (transposed)
#   b_ref   : (2H, 1)      stacked biases (column)
#   o_ref   : (H, Mt)      output node (V2) activation at t = n_times - 1
# -----------------------------------------------------------------------------
def _fused_temporal_kernel(x_ref, wext_ref, wcat_ref, b_ref, o_ref, *,
                           n_times, hidden):
    base = jnp.dot(wext_ref[...], x_ref[...], preferred_element_type=jnp.float32)
    base = base + b_ref[...]                    # (2H,1) lane-broadcast, once
    h = jnp.tanh(base)                          # peeled t=0: Wcat @ 0 == 0
    wcat = wcat_ref[...]
    for _ in range(n_times - 1):                # static unroll (n_times is small)
        h = jnp.tanh(base + jnp.dot(wcat, h, preferred_element_type=jnp.float32))
    o_ref[...] = h[hidden:, :]                  # only V2 rows; 8-sublane-aligned slice


def _pick_hw_tile(hw):
    # Single tile when possible; cap at 1024 lanes so base/h/dot-result live
    # set stays within the 64-vreg register file (spills hurt most on v5e).
    if hw <= 1024:
        return hw
    for tile in (1024, 512, 256, 128):
        if hw % tile == 0:
            return tile
    return hw


@functools.partial(jax.jit, static_argnames=("n_times",))
def temporal_graph_forward_pallas(inputs_nchw, stacked, n_times):
    """inputs_nchw: (N, C, H, W) f32 -> output-node activation at last step, NCHW."""
    assert n_times >= 1
    n, c, hh, ww = inputs_nchw.shape
    assert (c, hh, ww) == INPUT_SHAPE
    hw = hh * ww
    h2 = 2 * HIDDEN

    # free view: channels already on the sublane axis, positions on the lanes
    x_nchw_flat = inputs_nchw.reshape(n, c, hw)

    hw_tile = _pick_hw_tile(hw)
    grid = (n, hw // hw_tile)   # batch x position tiles, fully independent

    out = pl.pallas_call(
        functools.partial(_fused_temporal_kernel, n_times=n_times, hidden=HIDDEN),
        out_shape=jax.ShapeDtypeStruct((n, HIDDEN, hw), jnp.float32),
        grid=grid,
        in_specs=[
            pl.BlockSpec((pl.Squeezed(), c, hw_tile), lambda b, i: (b, 0, i)),
            pl.BlockSpec((h2, c), lambda b, i: (0, 0)),
            pl.BlockSpec((h2, h2), lambda b, i: (0, 0)),
            pl.BlockSpec((h2, 1), lambda b, i: (0, 0)),
        ],
        out_specs=pl.BlockSpec((pl.Squeezed(), HIDDEN, hw_tile),
                               lambda b, i: (b, 0, i)),
        compiler_params=pltpu.CompilerParams(
            dimension_semantics=("parallel", "parallel")),
    )(x_nchw_flat, stacked["w_ext_t"], stacked["w_cat_t"], stacked["b_col"])

    # free view back to NCHW (no transpose: layout already (N, C_out, H, W))
    return out.reshape(n, HIDDEN, hh, ww)


# -----------------------------------------------------------------------------
# Plain-JAX reference: node-by-node TemporalGraph.forward (same semantics)
# -----------------------------------------------------------------------------
def temporal_graph_forward_ref(inputs_nchw, params, n_times):
    n, c, hh, ww = inputs_nchw.shape
    m = n * hh * ww
    x_flat = jnp.transpose(inputs_nchw, (0, 2, 3, 1)).reshape(m, c)

    outputs = {node: jnp.zeros((m, OUT_CHANNELS[node]), jnp.float32) for node in NODES}
    states = {node: jnp.zeros((m, HIDDEN), jnp.float32) for node in NODES}

    for _ in range(n_times):
        new_outputs, new_states = {}, {}
        for node in NODES:
            curr_inputs = []
            if node in INPUT_NODES:
                curr_inputs.append(x_flat)                 # ff_input
            for pred in sorted(PREDECESSORS[node]):
                curr_inputs.append(outputs[pred])          # prev-timestep pred output
            harbor = jnp.concatenate(curr_inputs, axis=-1)
            p = params[node]
            out = jnp.tanh(harbor @ p["wx"] + states[node] @ p["wh"] + p["b"])
            new_outputs[node] = out
            new_states[node] = out
        outputs, states = new_outputs, new_states

    final = outputs[OUTPUT_NODE].reshape(n, hh, ww, HIDDEN)
    return jnp.transpose(final, (0, 3, 1, 2))


if __name__ == "__main__":
    key = jax.random.PRNGKey(0)
    k_in, k_p = jax.random.split(key)

    N = 2
    inputs = jax.random.normal(k_in, (N,) + INPUT_SHAPE, jnp.float32)  # (2,4,16,16)
    params = init_params(k_p)
    stacked = stack_params(params)     # hoisted weight stacking (once, at init)

    out = temporal_graph_forward_pallas(inputs, stacked, n_times=NUM_TIMESTEPS)
    out = jax.block_until_ready(out)

    ref = temporal_graph_forward_ref(inputs, params, n_times=NUM_TIMESTEPS)
    assert out.shape == (N, HIDDEN, INPUT_SHAPE[1], INPUT_SHAPE[2])
    assert jnp.allclose(out, ref, atol=1e-5, rtol=1e-5)

    print("KERNEL_OK")
</pallas_src>

<mosaic_0001>
module attributes {stable_mosaic.version = 11 : i64} {
  func.func @_fused_temporal_kernel(%arg0: i32, %arg1: i32, %arg2: memref<1x4x256xf32, #tpu.memory_space<vmem>>, %arg3: memref<16x4xf32, #tpu.memory_space<vmem>>, %arg4: memref<16x16xf32, #tpu.memory_space<vmem>>, %arg5: memref<16x1xf32, #tpu.memory_space<vmem>>, %arg6: memref<1x8x256xf32, #tpu.memory_space<vmem>>) attributes {dimension_semantics = [#tpu.dimension_semantics<parallel>, #tpu.dimension_semantics<parallel>], iteration_bounds = array<i64: 2, 1>, scalar_prefetch = 0 : i64, scratch_operands = 0 : i64, tpu.core_type = #tpu.core_type<tc>, window_params = [{transform_indices = @transform_0, window_bounds = array<i64: 1, 4, 256>}, {pipeline_mode = #tpu.pipeline_mode<synchronous>, transform_indices = @transform_1, window_bounds = array<i64: 16, 4>}, {pipeline_mode = #tpu.pipeline_mode<synchronous>, transform_indices = @transform_2, window_bounds = array<i64: 16, 16>}, {pipeline_mode = #tpu.pipeline_mode<synchronous>, transform_indices = @transform_3, window_bounds = array<i64: 16, 1>}, {transform_indices = @transform_4, window_bounds = array<i64: 1, 8, 256>}]} {
    %c0 = arith.constant 0 : index
    %c0_0 = arith.constant 0 : index
    %0 = vector.load %arg3[%c0, %c0_0] : memref<16x4xf32, #tpu.memory_space<vmem>>, vector<16x4xf32>
    %c0_1 = arith.constant 0 : index
    %c0_2 = arith.constant 0 : index
    %c0_3 = arith.constant 0 : index
    %1 = vector.load %arg2[%c0_1, %c0_2, %c0_3] : memref<1x4x256xf32, #tpu.memory_space<vmem>>, vector<1x4x256xf32>
    %2 = vector.shape_cast %1 : vector<1x4x256xf32> to vector<4x256xf32>
    %cst = arith.constant dense<0.000000e+00> : vector<16x256xf32>
    %3 = tpu.matmul %0, %2, %cst {dimension_numbers = #tpu.dot_dimension_numbers<[1], [0], [0], [1], [0, 0, 1, 1], [], []>} : vector<16x4xf32>, vector<4x256xf32>, vector<16x256xf32> -> vector<16x256xf32>
    %c0_4 = arith.constant 0 : index
    %c0_5 = arith.constant 0 : index
    %4 = vector.load %arg5[%c0_4, %c0_5] : memref<16x1xf32, #tpu.memory_space<vmem>>, vector<16x1xf32>
    %5 = vector.broadcast %4 : vector<16x1xf32> to vector<16x256xf32>
    %6 = arith.addf %3, %5 : vector<16x256xf32>
    %7 = math.tanh %6 : vector<16x256xf32>
    %c0_6 = arith.constant 0 : index
    %c0_7 = arith.constant 0 : index
    %8 = vector.load %arg4[%c0_6, %c0_7] : memref<16x16xf32, #tpu.memory_space<vmem>>, vector<16x16xf32>
    %cst_8 = arith.constant dense<0.000000e+00> : vector<16x256xf32>
    %9 = tpu.matmul %8, %7, %cst_8 {dimension_numbers = #tpu.dot_dimension_numbers<[1], [0], [0], [1], [0, 0, 1, 1], [], []>} : vector<16x16xf32>, vector<16x256xf32>, vector<16x256xf32> -> vector<16x256xf32>
    %10 = arith.addf %6, %9 : vector<16x256xf32>
    %11 = math.tanh %10 : vector<16x256xf32>
    %cst_9 = arith.constant dense<0.000000e+00> : vector<16x256xf32>
    %12 = tpu.matmul %8, %11, %cst_9 {dimension_numbers = #tpu.dot_dimension_numbers<[1], [0], [0], [1], [0, 0, 1, 1], [], []>} : vector<16x16xf32>, vector<16x256xf32>, vector<16x256xf32> -> vector<16x256xf32>
    %13 = arith.addf %6, %12 : vector<16x256xf32>
    %14 = math.tanh %13 : vector<16x256xf32>
    %15 = vector.extract_strided_slice %14 {offsets = [8, 0], sizes = [8, 256], strides = [1, 1]} : vector<16x256xf32> to vector<8x256xf32>
    %c0_10 = arith.constant 0 : index
    %c0_11 = arith.constant 0 : index
    %c0_12 = arith.constant 0 : index
    %16 = vector.load %arg6[%c0_10, %c0_11, %c0_12] : memref<1x8x256xf32, #tpu.memory_space<vmem>>, vector<1x8x256xf32>
    %17 = vector.shape_cast %16 : vector<1x8x256xf32> to vector<8x256xf32>
    %18 = vector.shape_cast %15 : vector<8x256xf32> to vector<1x8x256xf32>
    tpu.vector_store %arg6[%c0_10, %c0_11, %c0_12], %18 {strides = array<i32>} : memref<1x8x256xf32, #tpu.memory_space<vmem>>, vector<1x8x256xf32>,
    return
  }
  func.func @transform_0(%arg0: i32, %arg1: i32) -> (i32, i32, i32) {
    %c0_i32 = arith.constant 0 : i32
    %c0_i32_0 = arith.constant 0 : i32
    return %arg0, %c0_i32, %arg1 : i32, i32, i32
  }
  func.func @transform_1(%arg0: i32, %arg1: i32) -> (i32, i32) {
    %c0_i32 = arith.constant 0 : i32
    %c0_i32_0 = arith.constant 0 : i32
    %c0_i32_1 = arith.constant 0 : i32
    return %c0_i32, %c0_i32_0 : i32, i32
  }
  func.func @transform_2(%arg0: i32, %arg1: i32) -> (i32, i32) {
    %c0_i32 = arith.constant 0 : i32
    %c0_i32_0 = arith.constant 0 : i32
    %c0_i32_1 = arith.constant 0 : i32
    return %c0_i32, %c0_i32_0 : i32, i32
  }
  func.func @transform_3(%arg0: i32, %arg1: i32) -> (i32, i32) {
    %c0_i32 = arith.constant 0 : i32
    %c0_i32_0 = arith.constant 0 : i32
    %c0_i32_1 = arith.constant 0 : i32
    return %c0_i32, %c0_i32_0 : i32, i32
  }
  func.func @transform_4(%arg0: i32, %arg1: i32) -> (i32, i32, i32) {
    %c0_i32 = arith.constant 0 : i32
    %c0_i32_0 = arith.constant 0 : i32
    return %arg0, %c0_i32, %arg1 : i32, i32, i32
  }
}

</mosaic_0001>

<llo_original>
// kernel: temporal_graph_forward_pallas.1
$region0: #{temporal_graph_forward_pallas.1}
  #allocation0 [shape = 'u32[]', space=smem, size = 0x4, offset = 0x4, fixed_abs, tag = 'smem constant byte address 0x4 - core index']
  #allocation1 [shape = 'u32[144,128]{1,0:T(1,128)}', space=vmem, size = 0x12000, scoped, tag = 'internal scratch']
  %s0 = inlined_call_operand.vmem [shape: f32[2,4,256], index: 0, kind: input, shape index: {}]
  %s1 = inlined_call_operand.vmem [shape: f32[16,4], index: 1, kind: input, shape index: {}]
  %s2 = inlined_call_operand.vmem [shape: f32[16,16], index: 2, kind: input, shape index: {}]
  %s3 = inlined_call_operand.vmem [shape: f32[16,1], index: 3, kind: input, shape index: {}]
  %s4 = inlined_call_operand.vmem [shape: f32[2,8,256], index: 4, kind: output, shape index: {}]
  %s5 = sld [smem:[#allocation0]]
  $region49: #{temporal_graph_forward_pallas.1} parent=0
    _
  %s7 = ssub.s32 1, %s5
  %s8 = scalar_select 0, %s7, %s5
  loop: start=0, step=1, limit=4
  $region2: #{temporal_graph_forward_pallas.1} parent=0 // loop_pre_header
    _
  $region3: #{temporal_graph_forward_pallas.1} parent=0 // loop_header
    %s10 = sphi 0, %s14
    %p11 = scmp.ge.s32.totalorder %s10, 4
    %s17 = sphi 0, %s29
    %s18 = sphi 0, %s25
    %s19 = sphi 0, %s17
    %s20 = sphi 0, %s18
    %s21 = sphi 0, %s19
    %s22 = sphi 0, %s20
    %s34 = sphi 0, %s36
    %s37 = sphi 0, %s34
    %s38 = sphi 0, %s37
    %s54 = sphi 0, %s38
    %s58 = sphi 0, %s58
    %s60 = sphi 0, %s58
    %s61 = sphi 0, %s60
    %s75 = sphi 0, %s61
    %s79 = sphi 0, %s79
    %s81 = sphi 0, %s79
    %s82 = sphi 0, %s81
    %s96 = sphi 0, %s82
    %s100 = sphi 0, %s100
    %s102 = sphi 0, %s100
    %s103 = sphi 0, %s102
    %s117 = sphi 0, %s103
    %s125 = sphi 0, %s127
    %s128 = sphi 0, %s125
    %s129 = sphi 0, %s128
    %s145 = sphi 0, %s129
  $region4: #{temporal_graph_forward_pallas.1} parent=0 // loop_header_branch
    %13 = sbr.rel (%p11) target = $region8
  $region5: #{temporal_graph_forward_pallas.1} parent=0 // loop_body
    %s15 = ssub.s32 %s10, 1
    %s16 = ssub.s32 %s10, 2
    %s23 = sadd.s32 1, %s18
    %p24 = scmp.ge.s32.totalorder %s23, 1
    %s25 = scalar_select %p24, 0, %s23
    %s26 = sadd.s32 1, %s17
    %s27 = scalar_select %p24, %s26, %s17
    %p28 = scmp.ge.s32.totalorder %s27, 2
    %s29 = scalar_select %p28, 0, %s27
    %s30 = ssub.s32 %s17, %s29
    %s31 = ssub.s32 %s18, %s25
    %s32 = sor.u32 %s30, %s31
    %p33 = scmp.eq.s32.totalorder %s32, 0
    %s35 = sadd.s32 %s34, 1
    %s36 = scalar_select %p33, %s34, %s35
    %p39 = pneg %p33
    %p40 = scmp.eq.s32.totalorder %s10, 1
    %p41 = por %p39, %p40
    %p42 = scmp.ne.s32.totalorder %s34, %s37
    %p43 = scmp.eq.s32.totalorder %s10, 0
    %p44 = por %p42, %p43
    %p45 = scmp.ne.s32.totalorder %s34, %s37
    %p46 = scmp.eq.s32.totalorder %s15, 1
    %p47 = por %p45, %p46
    %p48 = scmp.ne.s32.totalorder %s37, %s38
    %p49 = scmp.eq.s32.totalorder %s15, 0
    %p50 = por %p48, %p49
    %p51 = scmp.ne.s32.totalorder %s37, %s38
    %p52 = scmp.eq.s32.totalorder %s16, 1
    %p53 = por %p51, %p52
    %p55 = scmp.ne.s32.totalorder %s38, %s54
    %p56 = scmp.eq.s32.totalorder %s16, 0
    %p57 = por %p55, %p56
    %s59 = sadd.s32 %s58, 1
    %p62 = scmp.eq.s32.totalorder %s10, 1
    %p63 = scmp.ne.s32.totalorder %s58, %s60
    %p64 = scmp.eq.s32.totalorder %s10, 0
    %p65 = por %p63, %p64
    %p66 = scmp.ne.s32.totalorder %s58, %s60
    %p67 = scmp.eq.s32.totalorder %s15, 1
    %p68 = por %p66, %p67
    %p69 = scmp.ne.s32.totalorder %s60, %s61
    %p70 = scmp.eq.s32.totalorder %s15, 0
    %p71 = por %p69, %p70
    %p72 = scmp.ne.s32.totalorder %s60, %s61
    %p73 = scmp.eq.s32.totalorder %s16, 1
    %p74 = por %p72, %p73
    %p76 = scmp.ne.s32.totalorder %s61, %s75
    %p77 = scmp.eq.s32.totalorder %s16, 0
    %p78 = por %p76, %p77
    %s80 = sadd.s32 %s79, 1
    %p83 = scmp.eq.s32.totalorder %s10, 1
    %p84 = scmp.ne.s32.totalorder %s79, %s81
    %p85 = scmp.eq.s32.totalorder %s10, 0
    %p86 = por %p84, %p85
    %p87 = scmp.ne.s32.totalorder %s79, %s81
    %p88 = scmp.eq.s32.totalorder %s15, 1
    %p89 = por %p87, %p88
    %p90 = scmp.ne.s32.totalorder %s81, %s82
    %p91 = scmp.eq.s32.totalorder %s15, 0
    %p92 = por %p90, %p91
    %p93 = scmp.ne.s32.totalorder %s81, %s82
    %p94 = scmp.eq.s32.totalorder %s16, 1
    %p95 = por %p93, %p94
    %p97 = scmp.ne.s32.totalorder %s82, %s96
    %p98 = scmp.eq.s32.totalorder %s16, 0
    %p99 = por %p97, %p98
    %s101 = sadd.s32 %s100, 1
    %p104 = scmp.eq.s32.totalorder %s10, 1
    %p105 = scmp.ne.s32.totalorder %s100, %s102
    %p106 = scmp.eq.s32.totalorder %s10, 0
    %p107 = por %p105, %p106
    %p108 = scmp.ne.s32.totalorder %s100, %s102
    %p109 = scmp.eq.s32.totalorder %s15, 1
    %p110 = por %p108, %p109
    %p111 = scmp.ne.s32.totalorder %s102, %s103
    %p112 = scmp.eq.s32.totalorder %s15, 0
    %p113 = por %p111, %p112
    %p114 = scmp.ne.s32.totalorder %s102, %s103
    %p115 = scmp.eq.s32.totalorder %s16, 1
    %p116 = por %p114, %p115
    %p118 = scmp.ne.s32.totalorder %s103, %s117
    %p119 = scmp.eq.s32.totalorder %s16, 0
    %p120 = por %p118, %p119
    %s121 = ssub.s32 %s17, %s29
    %s122 = ssub.s32 %s18, %s25
    %s123 = sor.u32 %s121, %s122
    %p124 = scmp.eq.s32.totalorder %s123, 0
    %s126 = sadd.s32 %s125, 1
    %s127 = scalar_select %p124, %s125, %s126
    %p130 = pneg %p124
    %p131 = scmp.eq.s32.totalorder %s10, 1
    %p132 = por %p130, %p131
    %p133 = scmp.ne.s32.totalorder %s125, %s128
    %p134 = scmp.eq.s32.totalorder %s10, 0
    %p135 = por %p133, %p134
    %p136 = scmp.ne.s32.totalorder %s125, %s128
    %p137 = scmp.eq.s32.totalorder %s15, 1
    %p138 = por %p136, %p137
    %p139 = scmp.ne.s32.totalorder %s128, %s129
    %p140 = scmp.eq.s32.totalorder %s15, 0
    %p141 = por %p139, %p140
    %p142 = scmp.ne.s32.totalorder %s128, %s129
    %p143 = scmp.eq.s32.totalorder %s16, 1
    %p144 = por %p142, %p143
    %p146 = scmp.ne.s32.totalorder %s129, %s145
    %p147 = scmp.eq.s32.totalorder %s16, 0
    %p148 = por %p146, %p147
    %p149 = scmp.le.s32.totalorder 1, %s10
    %p150 = scmp.lt.s32.totalorder %s10, 3
    %p151 = pnand %p149, %p150
    %p152 = pneg %p151
    // Predicated region
    $region9: #{temporal_graph_forward_pallas.1} parent=5 // pred_check
      _
    $region10: #{temporal_graph_forward_pallas.1} parent=5 // pred_check_branch
      %154 = sbr.rel (%p151) target = $region12
    $region11: #{temporal_graph_forward_pallas.1} parent=5 // pred_region
      %s155 = ssub.s32 %s10, 1
      // Predicated region
      $region13: #{temporal_graph_forward_pallas.1} parent=11 // pred_check
        %p156 = pneg %p71
      $region14: #{temporal_graph_forward_pallas.1} parent=11 // pred_check_branch
        %158 = sbr.rel (%p156) target = $region16
      $region15: #{temporal_graph_forward_pallas.1} parent=11 // pred_region
        _
      $region16: #{temporal_graph_forward_pallas.1} parent=11 // pred_fallthru
        _
      // Predicated region
      $region17: #{temporal_graph_forward_pallas.1} parent=11 // pred_check
        %p159 = pneg %p92
      $region18: #{temporal_graph_forward_pallas.1} parent=11 // pred_check_branch
        %161 = sbr.rel (%p159) target = $region20
      $region19: #{temporal_graph_forward_pallas.1} parent=11 // pred_region
        _
      $region20: #{temporal_graph_forward_pallas.1} parent=11 // pred_fallthru
        _
      // Predicated region
      $region21: #{temporal_graph_forward_pallas.1} parent=11 // pred_check
        %p162 = pneg %p113
      $region22: #{temporal_graph_forward_pallas.1} parent=11 // pred_check_branch
        %164 = sbr.rel (%p162) target = $region24
      $region23: #{temporal_graph_forward_pallas.1} parent=11 // pred_region
        _
      $region24: #{temporal_graph_forward_pallas.1} parent=11 // pred_fallthru
        _
    $region12: #{temporal_graph_forward_pallas.1} parent=5 // pred_fallthru
      _
    %p165 = scmp.lt.s32.totalorder %s10, 2
    // Predicated region
    $region25: #{temporal_graph_forward_pallas.1} parent=5 // pred_check
      %p166 = pneg %p165
    $region26: #{temporal_graph_forward_pallas.1} parent=5 // pred_check_branch
      %168 = sbr.rel (%p166) target = $region28
    $region27: #{temporal_graph_forward_pallas.1} parent=5 // pred_region
      // Predicated region
      $region29: #{temporal_graph_forward_pallas.1} parent=27 // pred_check
        %p169 = pneg %p44
      $region30: #{temporal_graph_forward_pallas.1} parent=27 // pred_check_branch
        %171 = sbr.rel (%p169) target = $region32
      $region31: #{temporal_graph_forward_pallas.1} parent=27 // pred_region
        %s172 = smul.u32 2, %s18
        %p173 = scmp.lt.s32.totalorder %s17, 1
        %s174 = scalar_select %p173, %s17, 1
        %p175 = scmp.lt.s32.totalorder %s172, 1
        %s176 = scalar_select %p175, %s172, 1
        %s177 = smul.addr %s174, 2
        %s178 = sadd.s32 %s176, %s177
        %s179 = smul.addr %s178, 4
        %s180 = scalar_lea.vmem %s0, %s179
        %s181 = smul.u32 2, %s18
      $region32: #{temporal_graph_forward_pallas.1} parent=27 // pred_fallthru
        _
    $region28: #{temporal_graph_forward_pallas.1} parent=5 // pred_fallthru
      _
    %p182 = scmp.le.s32.totalorder 1, %s10
    %p183 = scmp.lt.s32.totalorder %s10, 3
    %p184 = pnand %p182, %p183
    %p185 = pneg %p184
    // Predicated region
    $region33: #{temporal_graph_forward_pallas.1} parent=5 // pred_check
      _
    $region34: #{temporal_graph_forward_pallas.1} parent=5 // pred_check_branch
      %187 = sbr.rel (%p184) target = $region36
    $region35: #{temporal_graph_forward_pallas.1} parent=5 // pred_region
      %s188 = ssub.s32 %s10, 1
      %s189 = smul.u32 2, %s20
      %p190 = scmp.lt.s32.totalorder %s19, 1
      %s191 = scalar_select %p190, %s19, 1
      %p192 = scmp.lt.s32.totalorder %s189, 1
      %s193 = scalar_select %p192, %s189, 1
      %s194 = smul.addr %s191, 2
      %s195 = sadd.s32 %s193, %s194
      %s196 = smul.addr %s195, 4
      %s197 = scalar_lea.vmem %s0, %s196
      %p198 = pneg %p50
      %p199 = pneg %p47
      %p200 = pneg %p71
      %p201 = pneg %p68
      %p202 = pneg %p92
      %p203 = pneg %p89
      %p204 = pneg %p113
      %p205 = pneg %p110
      %p206 = pneg %p141
      %p207 = pneg %p138
      %s208 = smul.u32 2, %s20
      %p209 = scmp.lt.s32.totalorder %s19, 1
      %s210 = scalar_select %p209, %s19, 1
      %p211 = scmp.lt.s32.totalorder %s208, 1
      %s212 = scalar_select %p211, %s208, 1
      %s213 = smul.addr %s210, 2
      %s214 = sadd.s32 %s212, %s213
      %s215 = smul.addr %s214, 8
      %s216 = scalar_lea.vmem %s4, %s215
      %s217 = smul.u32 2, %s20
      %p218 = scmp.lt.s32.totalorder %s19, 1
      %s219 = scalar_select %p218, %s19, 1
      %p220 = scmp.lt.s32.totalorder %s217, 1
      %s221 = scalar_select %p220, %s217, 1
      %s222 = smul.addr %s219, 2
      %s223 = sadd.s32 %s221, %s222
      %s224 = smul.addr %s223, 4
      %s225 = scalar_lea.vmem %s0, %s224
      %s226 = smul.u32 2, %s20
      %s227 = smul.u32 2, %s20
      %p228 = scmp.lt.s32.totalorder %s19, 1
      %s229 = scalar_select %p228, %s19, 1
      %p230 = scmp.lt.s32.totalorder %s227, 1
      %s231 = scalar_select %p230, %s227, 1
      %s232 = smul.addr %s229, 2
      %s233 = sadd.s32 %s231, %s232
      %s234 = smul.addr %s233, 8
      %s235 = scalar_lea.vmem %s4, %s234
      %s236 = smul.u32 2, %s20
      %v237 = vld [vmem:[%s1] sm:$0xff]
      %v238 = vld [vmem:[%s1 + $0x8] sm:$0xff]
      %v239 = vld [vmem:[%s225] sm:$0xff]
      %v240 = vld [vmem:[%s3] sm:$0xff]
      %v241 = vld [vmem:[%s3 + $0x8] sm:$0xff]
      %243 = vset.pattern.permute.xlu0 0
      %244 = vperm.xlu0 %243, %v240
      %v245 = vpop.permute.xlu0 %244
      %248 = vset.pattern.permute.xlu0 0
      %249 = vperm.xlu0 %248, %v241
      %v250 = vpop.permute.xlu0 %249
      %v253 = vcombine.high %v239, %v239
      %vm254 = vcmask 31744
      %v256 = vsel %vm254, %v237, 0
      %v259 = vsel %vm254, %v238, 0
      %vm261 = vcmask 1043456
      %v262 = vsel %vm261, %v239, 0
      %v264 = vsel %vm261, %v253, 0
      %266 = vmatprep.subr.mxu0 %v264
      %267 = vmatpush1.msra.mxu0 %v262
      %268 = vmatprep.subr.mxu0 0.0
      %269 = vmatpush1.msra.mxu0 0.0
      %270 = vmatprep.subr.mxu0 0.0
      %271 = vmatpush1.msra.mxu0 0.0
      %272 = vmatprep.subr.mxu0 0.0
      %273 = vmatpush1.msra.mxu0 0.0
      %274 = vmatprep.subr.mxu0 0.0
      %275 = vmatpush1.msra.mxu0 0.0
      %276 = vmatprep.subr.mxu0 0.0
      %277 = vmatpush1.msra.mxu0 0.0
      %278 = vmatprep.subr.mxu0 0.0
      %279 = vmatpush1.msra.mxu0 0.0
      %280 = vmatprep.subr.mxu0 0.0
      %281 = vmatpush1.msra.mxu0 0.0
      %282 = vmatprep.subr.mxu0 0.0
      %283 = vmatpush1.msra.mxu0 0.0
      %284 = vmatprep.subr.mxu0 0.0
      %285 = vmatpush1.msra.mxu0 0.0
      %286 = vmatprep.subr.mxu0 0.0
      %287 = vmatpush1.msra.mxu0 0.0
      %288 = vmatprep.subr.mxu0 0.0
      %289 = vmatpush1.msra.mxu0 0.0
      %290 = vmatprep.subr.mxu0 0.0
      %291 = vmatpush1.msra.mxu0 0.0
      %292 = vmatprep.subr.mxu0 0.0
      %293 = vmatpush1.msra.mxu0 0.0
      %294 = vmatprep.subr.mxu0 0.0
      %295 = vmatpush1.msra.mxu0 0.0
      %296 = vmatprep.subr.mxu0 0.0
      %297 = vmatpush1.msra.mxu0 0.0
      %298 = vmatprep.subr.mxu0 0.0
      %299 = vmatpush1.msra.mxu0 0.0
      %300 = vmatprep.subr.mxu0 0.0
      %301 = vmatpush1.msra.mxu0 0.0
      %302 = vmatprep.subr.mxu0 0.0
      %303 = vmatpush1.msra.mxu0 0.0
      %304 = vmatprep.subr.mxu0 0.0
      %305 = vmatpush1.msra.mxu0 0.0
      %306 = vmatprep.subr.mxu0 0.0
      %307 = vmatpush1.msra.mxu0 0.0
      %308 = vmatprep.subr.mxu0 0.0
      %309 = vmatpush1.msra.mxu0 0.0
      %310 = vmatprep.subr.mxu0 0.0
      %311 = vmatpush1.msra.mxu0 0.0
      %312 = vmatprep.subr.mxu0 0.0
      %313 = vmatpush1.msra.mxu0 0.0
      %314 = vmatprep.subr.mxu0 0.0
      %315 = vmatpush1.msra.mxu0 0.0
      %316 = vmatprep.subr.mxu0 0.0
      %317 = vmatpush1.msra.mxu0 0.0
      %318 = vmatprep.subr.mxu0 0.0
      %319 = vmatpush1.msra.mxu0 0.0
      %320 = vmatprep.subr.mxu0 0.0
      %321 = vmatpush1.msra.mxu0 0.0
      %322 = vmatprep.subr.mxu0 0.0
      %323 = vmatpush1.msra.mxu0 0.0
      %324 = vmatprep.subr.mxu0 0.0
      %325 = vmatpush1.msra.mxu0 0.0
      %326 = vmatprep.subr.mxu0 0.0
      %327 = vmatpush1.msra.mxu0 0.0
      %328 = vmatprep.subr.mxu0 0.0
      %329 = vmatpush1.msra.mxu0 0.0
      %330 = vmatprep.mubr.f32.mxu0 0.0
      %331 = vmatmul.mubr.f32.gmra.mrb[0].mxu0 %v256
      %v332 = vpop.f32.mrb[0].mxu0
      %v333 = vadd.f32 %v245, %v332
      %v334 = vpop.f32.mrb[0].mxu0
      %v335 = vadd.f32 %v245, %v334
      %336 = vmatprep.mubr.f32.mxu0 0.0
      %337 = vmatmul.mubr.f32.gmra.mrb[0].mxu0 %v259
      %v338 = vpop.f32.mrb[0].mxu0
      %v339 = vadd.f32 %v250, %v338
      %v340 = vpop.f32.mrb[0].mxu0
      %v341 = vadd.f32 %v250, %v340
      %342 = vdwg.mxu0
      %v343 = vtanh.pop %v333
      %v344 = vtanh.pop %v335
      %v345 = vtanh.pop %v339
      %v346 = vtanh.pop %v341
      %v347 = vld [vmem:[%s2] sm:$0xff]
      %v348 = vld [vmem:[%s2 + $0x8] sm:$0xff]
      %vm349 = vcmask 130048
      %v351 = vsel %vm349, %v347, 0
      %v354 = vsel %vm349, %v348, 0
      %356 = vmatprep.subr.mxu0 %v344
      %357 = vmatpush1.msra.mxu0 %v343
      %358 = vmatprep.subr.mxu0 %v346
      %359 = vmatpush1.msra.mxu0 %v345
      %360 = vmatprep.subr.mxu0 0.0
      %361 = vmatpush1.msra.mxu0 0.0
      %362 = vmatprep.subr.mxu0 0.0
      %363 = vmatpush1.msra.mxu0 0.0
      %364 = vmatprep.subr.mxu0 0.0
      %365 = vmatpush1.msra.mxu0 0.0
      %366 = vmatprep.subr.mxu0 0.0
      %367 = vmatpush1.msra.mxu0 0.0
      %368 = vmatprep.subr.mxu0 0.0
      %369 = vmatpush1.msra.mxu0 0.0
      %370 = vmatprep.subr.mxu0 0.0
      %371 = vmatpush1.msra.mxu0 0.0
      %372 = vmatprep.subr.mxu0 0.0
      %373 = vmatpush1.msra.mxu0 0.0
      %374 = vmatprep.subr.mxu0 0.0
      %375 = vmatpush1.msra.mxu0 0.0
      %376 = vmatprep.subr.mxu0 0.0
      %377 = vmatpush1.msra.mxu0 0.0
      %378 = vmatprep.subr.mxu0 0.0
      %379 = vmatpush1.msra.mxu0 0.0
      %380 = vmatprep.subr.mxu0 0.0
      %381 = vmatpush1.msra.mxu0 0.0
      %382 = vmatprep.subr.mxu0 0.0
      %383 = vmatpush1.msra.mxu0 0.0
      %384 = vmatprep.subr.mxu0 0.0
      %385 = vmatpush1.msra.mxu0 0.0
      %386 = vmatprep.subr.mxu0 0.0
      %387 = vmatpush1.msra.mxu0 0.0
      %388 = vmatprep.subr.mxu0 0.0
      %389 = vmatpush1.msra.mxu0 0.0
      %390 = vmatprep.subr.mxu0 0.0
      %391 = vmatpush1.msra.mxu0 0.0
      %392 = vmatprep.subr.mxu0 0.0
      %393 = vmatpush1.msra.mxu0 0.0
      %394 = vmatprep.subr.mxu0 0.0
      %395 = vmatpush1.msra.mxu0 0.0
      %396 = vmatprep.subr.mxu0 0.0
      %397 = vmatpush1.msra.mxu0 0.0
      %398 = vmatprep.subr.mxu0 0.0
      %399 = vmatpush1.msra.mxu0 0.0
      %400 = vmatprep.subr.mxu0 0.0
      %401 = vmatpush1.msra.mxu0 0.0
      %402 = vmatprep.subr.mxu0 0.0
      %403 = vmatpush1.msra.mxu0 0.0
      %404 = vmatprep.subr.mxu0 0.0
      %405 = vmatpush1.msra.mxu0 0.0
      %406 = vmatprep.subr.mxu0 0.0
      %407 = vmatpush1.msra.mxu0 0.0
      %408 = vmatprep.subr.mxu0 0.0
      %409 = vmatpush1.msra.mxu0 0.0
      %410 = vmatprep.subr.mxu0 0.0
      %411 = vmatpush1.msra.mxu0 0.0
      %412 = vmatprep.subr.mxu0 0.0
      %413 = vmatpush1.msra.mxu0 0.0
      %414 = vmatprep.subr.mxu0 0.0
      %415 = vmatpush1.msra.mxu0 0.0
      %416 = vmatprep.subr.mxu0 0.0
      %417 = vmatpush1.msra.mxu0 0.0
      %418 = vmatprep.subr.mxu0 0.0
      %419 = vmatpush1.msra.mxu0 0.0
      %420 = vmatprep.mubr.f32.mxu0 0.0
      %421 = vmatmul.mubr.f32.gmra.mrb[0].mxu0 %v351
      %v422 = vpop.f32.mrb[0].mxu0
      %v423 = vadd.f32 0.0, %v422
      %v424 = vpop.f32.mrb[0].mxu0
      %v425 = vadd.f32 0.0, %v424
      %426 = vmatprep.mubr.f32.mxu0 0.0
      %427 = vmatmul.mubr.f32.gmra.mrb[0].mxu0 %v354
      %v428 = vpop.f32.mrb[0].mxu0
      %v429 = vadd.f32 0.0, %v428
      %v430 = vpop.f32.mrb[0].mxu0
      %v431 = vadd.f32 0.0, %v430
      %432 = vdwg.mxu0
      %v433 = vadd.f32 %v333, %v423
      %v434 = vadd.f32 %v335, %v425
      %v435 = vadd.f32 %v339, %v429
      %v436 = vadd.f32 %v341, %v431
      %v437 = vtanh.pop %v433
      %v438 = vtanh.pop %v434
      %v439 = vtanh.pop %v435
      %v440 = vtanh.pop %v436
      %441 = vmatprep.subr.mxu0 %v438
      %442 = vmatpush1.msra.mxu0 %v437
      %443 = vmatprep.subr.mxu0 %v440
      %444 = vmatpush1.msra.mxu0 %v439
      %445 = vmatprep.subr.mxu0 0.0
      %446 = vmatpush1.msra.mxu0 0.0
      %447 = vmatprep.subr.mxu0 0.0
      %448 = vmatpush1.msra.mxu0 0.0
      %449 = vmatprep.subr.mxu0 0.0
      %450 = vmatpush1.msra.mxu0 0.0
      %451 = vmatprep.subr.mxu0 0.0
      %452 = vmatpush1.msra.mxu0 0.0
      %453 = vmatprep.subr.mxu0 0.0
      %454 = vmatpush1.msra.mxu0 0.0
      %455 = vmatprep.subr.mxu0 0.0
      %456 = vmatpush1.msra.mxu0 0.0
      %457 = vmatprep.subr.mxu0 0.0
      %458 = vmatpush1.msra.mxu0 0.0
      %459 = vmatprep.subr.mxu0 0.0
      %460 = vmatpush1.msra.mxu0 0.0
      %461 = vmatprep.subr.mxu0 0.0
      %462 = vmatpush1.msra.mxu0 0.0
      %463 = vmatprep.subr.mxu0 0.0
      %464 = vmatpush1.msra.mxu0 0.0
      %465 = vmatprep.subr.mxu0 0.0
      %466 = vmatpush1.msra.mxu0 0.0
      %467 = vmatprep.subr.mxu0 0.0
      %468 = vmatpush1.msra.mxu0 0.0
      %469 = vmatprep.subr.mxu0 0.0
      %470 = vmatpush1.msra.mxu0 0.0
      %471 = vmatprep.subr.mxu0 0.0
      %472 = vmatpush1.msra.mxu0 0.0
      %473 = vmatprep.subr.mxu0 0.0
      %474 = vmatpush1.msra.mxu0 0.0
      %475 = vmatprep.subr.mxu0 0.0
      %476 = vmatpush1.msra.mxu0 0.0
      %477 = vmatprep.subr.mxu0 0.0
      %478 = vmatpush1.msra.mxu0 0.0
      %479 = vmatprep.subr.mxu0 0.0
      %480 = vmatpush1.msra.mxu0 0.0
      %481 = vmatprep.subr.mxu0 0.0
      %482 = vmatpush1.msra.mxu0 0.0
      %483 = vmatprep.subr.mxu0 0.0
      %484 = vmatpush1.msra.mxu0 0.0
      %485 = vmatprep.subr.mxu0 0.0
      %486 = vmatpush1.msra.mxu0 0.0
      %487 = vmatprep.subr.mxu0 0.0
      %488 = vmatpush1.msra.mxu0 0.0
      %489 = vmatprep.subr.mxu0 0.0
      %490 = vmatpush1.msra.mxu0 0.0
      %491 = vmatprep.subr.mxu0 0.0
      %492 = vmatpush1.msra.mxu0 0.0
      %493 = vmatprep.subr.mxu0 0.0
      %494 = vmatpush1.msra.mxu0 0.0
      %495 = vmatprep.subr.mxu0 0.0
      %496 = vmatpush1.msra.mxu0 0.0
      %497 = vmatprep.subr.mxu0 0.0
      %498 = vmatpush1.msra.mxu0 0.0
      %499 = vmatprep.subr.mxu0 0.0
      %500 = vmatpush1.msra.mxu0 0.0
      %501 = vmatprep.subr.mxu0 0.0
      %502 = vmatpush1.msra.mxu0 0.0
      %503 = vmatprep.subr.mxu0 0.0
      %504 = vmatpush1.msra.mxu0 0.0
      %505 = vmatprep.mubr.f32.mxu0 0.0
      %506 = vmatmul.mubr.f32.gmra.mrb[0].mxu0 %v351
      %v507 = vpop.f32.mrb[0].mxu0
      %v508 = vpop.f32.mrb[0].mxu0
      %509 = vmatprep.mubr.f32.mxu0 0.0
      %510 = vmatmul.mubr.f32.gmra.mrb[0].mxu0 %v354
      %v511 = vpop.f32.mrb[0].mxu0
      %v512 = vadd.f32 0.0, %v511
      %v513 = vpop.f32.mrb[0].mxu0
      %v514 = vadd.f32 0.0, %v513
      %515 = vdwg.mxu0
      %v516 = vadd.f32 %v339, %v512
      %v517 = vadd.f32 %v341, %v514
      %v518 = vtanh.pop %v516
      %v519 = vtanh.pop %v517
      %520 = vst [vmem:[%s235] sm:$0xff] %v518
      %521 = vst [vmem:[%s235 + $0x8] sm:$0xff] %v519
      %s522 = smul.u32 2, %s20
      %p523 = scmp.lt.s32.totalorder %s19, 1
      %s524 = scalar_select %p523, %s19, 1
      %p525 = scmp.lt.s32.totalorder %s522, 1
      %s526 = scalar_select %p525, %s522, 1
      %s527 = smul.addr %s524, 2
      %s528 = sadd.s32 %s526, %s527
      %s529 = smul.addr %s528, 8
      %s530 = scalar_lea.vmem %s4, %s529
      // Predicated region
      $region37: #{temporal_graph_forward_pallas.1} parent=35 // pred_check
        %p531 = pneg %p138
      $region38: #{temporal_graph_forward_pallas.1} parent=35 // pred_check_branch
        %533 = sbr.rel (%p531) target = $region40
      $region39: #{temporal_graph_forward_pallas.1} parent=35 // pred_region
        %s534 = smul.u32 2, %s20
      $region40: #{temporal_graph_forward_pallas.1} parent=35 // pred_fallthru
        _
    $region36: #{temporal_graph_forward_pallas.1} parent=5 // pred_fallthru
      _
    %p535 = scmp.le.s32.totalorder 2, %s10
    // Predicated region
    $region41: #{temporal_graph_forward_pallas.1} parent=5 // pred_check
      %p536 = pneg %p535
    $region42: #{temporal_graph_forward_pallas.1} parent=5 // pred_check_branch
      %538 = sbr.rel (%p536) target = $region44
    $region43: #{temporal_graph_forward_pallas.1} parent=5 // pred_region
      %s539 = ssub.s32 %s10, 2
      // Predicated region
      $region45: #{temporal_graph_forward_pallas.1} parent=43 // pred_check
        %p540 = pneg %p144
      $region46: #{temporal_graph_forward_pallas.1} parent=43 // pred_check_branch
        %542 = sbr.rel (%p540) target = $region48
      $region47: #{temporal_graph_forward_pallas.1} parent=43 // pred_region
        %s543 = smul.u32 2, %s22
        %p544 = scmp.lt.s32.totalorder %s21, 1
        %s545 = scalar_select %p544, %s21, 1
        %p546 = scmp.lt.s32.totalorder %s543, 1
        %s547 = scalar_select %p546, %s543, 1
        %s548 = smul.addr %s545, 2
        %s549 = sadd.s32 %s547, %s548
        %s550 = smul.addr %s549, 8
        %s551 = scalar_lea.vmem %s4, %s550
      $region48: #{temporal_graph_forward_pallas.1} parent=43 // pred_fallthru
        _
    $region44: #{temporal_graph_forward_pallas.1} parent=5 // pred_fallthru
      _
  $region6: #{temporal_graph_forward_pallas.1} parent=0 // loop_footer
    %s14 = sadd.s32 1, %s10
  $region7: #{temporal_graph_forward_pallas.1} parent=0 // loop_footer_branch
    %9 = sbr.rel target = $region3
  $region8: #{temporal_graph_forward_pallas.1} parent=0 // loop_exit
    _

</llo_original>
